<compile_context>
chip_gen: v6e
topology: v6e:2x2x1
jax: 0.10.0
libtpu: 0.0.40
codegen_flags: <defaults>
</compile_context>

<pallas_src>
import functools

import jax
import jax.numpy as jnp
import numpy as np
from jax.experimental import pallas as pl
from jax.experimental.pallas import tpu as pltpu

HIDDEN = 128
N_PAD = 128  # lane-aligned padded atom width


def _round_up(x, m):
    return (x + m - 1) // m * m


def _dqn_kernel(action_size, n_pad,
                x_ref,
                w1_ref, b1_ref,
                w2_ref, b2_ref,
                wva1_ref, bva1_ref,
                wva2_ref, bva2_ref,
                out_ref):
    A, NP = action_size, n_pad

    x = x_ref[...].astype(jnp.float32)

    # Shared trunk: fc1 -> ReLU -> fc2 -> ReLU
    h1 = jnp.maximum(
        jnp.dot(x, w1_ref[...], preferred_element_type=jnp.float32) + b1_ref[...], 0.0)
    h2 = jnp.maximum(
        jnp.dot(h1, w2_ref[...], preferred_element_type=jnp.float32) + b2_ref[...], 0.0)

    # Fused value|advantage first hidden layer: one (H, 2H) matmul.
    hva = jnp.maximum(
        jnp.dot(h2, wva1_ref[...], preferred_element_type=jnp.float32) + bva1_ref[...], 0.0)

    # Fused block-diagonal head matmul: (TB, 2H) @ (2H, NP + A*NP).
    # Columns [:NP] are the value head; padded atom lanes of its bias carry
    # -1e30, which is the softmax mask.  Columns [NP:] are the advantage head
    # (padded atom lanes are exactly 0 there).
    heads = jnp.dot(hva, wva2_ref[...], preferred_element_type=jnp.float32) + bva2_ref[...]
    value = heads[:, :NP]                                        # (TB, NP)
    adv_slices = [heads[:, NP + a * NP: NP + (a + 1) * NP] for a in range(A)]

    # Dueling aggregation: all slices are 128-lane aligned.
    adv_sum = adv_slices[0]
    for a in range(1, A):
        adv_sum = adv_sum + adv_slices[a]
    adv_mean = adv_sum * (1.0 / A)

    for a in range(A):
        q = value + adv_slices[a] - adv_mean                     # padded lanes ~ -1e30
        q = q - jnp.max(q, axis=-1, keepdims=True)
        e = jnp.exp(q)                                           # padded lanes -> exactly 0
        p = e / jnp.sum(e, axis=-1, keepdims=True)               # exact division (1e-5 tol)
        # Direct lane-aligned, unmasked wide store for this action.
        out_ref[:, a * NP:(a + 1) * NP] = p.astype(out_ref.dtype)


def prepare_params(params, *, action_size, n_atoms, n_pad=N_PAD):
    """Pad / fuse raw (PyTorch-layout) params for the kernel."""
    A, N, NP = action_size, n_atoms, n_pad
    pad_cols = NP - N
    H = params["w2"].shape[1]

    # Fuse value/advantage first hidden layers: (H, 2H) and (1, 2H).
    wva1 = jnp.concatenate([params["wv1"], params["wa1"]], axis=1)
    bva1 = jnp.concatenate([params["bv1"], params["ba1"]], axis=1)

    # Value head, atoms padded to NP; softmax mask baked into the bias pad
    # lanes (-1e30 in bv2 ONLY -- it must not go into ba2, where it would
    # cancel through adv - adv_mean).
    wv2 = jnp.pad(params["wv2"], ((0, 0), (0, pad_cols)))
    bv2 = jnp.concatenate(
        [params["bv2"].astype(jnp.float32),
         jnp.full((1, pad_cols), -1e30, jnp.float32)], axis=1)

    # Advantage head padded per action: (H, A*N) -> (H, A*NP); pad lanes are 0.
    wa2 = params["wa2"].reshape(H, A, N)
    wa2 = jnp.pad(wa2, ((0, 0), (0, 0), (0, pad_cols))).reshape(H, A * NP)
    ba2 = params["ba2"].reshape(1, A, N)
    ba2 = jnp.pad(ba2, ((0, 0), (0, 0), (0, pad_cols))).reshape(1, A * NP)

    # Block-diagonal fusion of the two head matmuls: (2H, NP + A*NP).
    wva2 = jnp.concatenate(
        [jnp.concatenate([wv2, jnp.zeros((H, A * NP), jnp.float32)], axis=1),
         jnp.concatenate([jnp.zeros((H, NP), jnp.float32), wa2], axis=1)],
        axis=0)
    bva2 = jnp.concatenate([bv2, ba2], axis=1)

    return {
        "w1": params["w1"], "b1": params["b1"],
        "w2": params["w2"], "b2": params["b2"],
        "wva1": wva1, "bva1": bva1,
        "wva2": wva2, "bva2": bva2,
    }


def distributional_dqn_forward(state, params, *, action_size, n_atoms,
                               block_b=256, n_pad=N_PAD):
    B, S = state.shape
    A, NP = action_size, n_pad

    # Pick the number of grid steps first (ceil(B / block_b)); make it even
    # when >1 so v7x's two TensorCores get balanced work, then size TB to
    # minimize batch padding.  TB is always a multiple of 8 sublanes.
    num_steps = -(-B // block_b)
    if num_steps > 1 and num_steps % 2 == 1:
        num_steps += 1
    TB = _round_up(-(-B // num_steps), 8)
    B_pad = _round_up(B, TB)
    if B_pad != B:
        state = jnp.pad(state, ((0, B_pad - B), (0, 0)))

    pp = prepare_params(params, action_size=action_size, n_atoms=n_atoms, n_pad=n_pad)
    kernel = functools.partial(_dqn_kernel, A, NP)

    weight_args = (
        pp["w1"], pp["b1"],
        pp["w2"], pp["b2"],
        pp["wva1"], pp["bva1"],
        pp["wva2"], pp["bva2"],
    )

    def const2d(arr):
        # Whole array, DMA'd once and kept VMEM-resident across grid steps.
        return pl.BlockSpec(arr.shape, lambda i: (0, 0))

    in_specs = [pl.BlockSpec((TB, S), lambda i: (i, 0))] + [const2d(w) for w in weight_args]
    out_spec = pl.BlockSpec((TB, A * NP), lambda i: (i, 0))

    H = int(pp["w1"].shape[1])
    flops = int(2 * B_pad * (S * H + H * H + H * 2 * H + 2 * H * (NP + A * NP)))
    weight_bytes = int(sum(int(np.prod(w.shape)) * 4 for w in weight_args))
    cost = pl.CostEstimate(
        flops=flops,
        transcendentals=int(B_pad * A * NP),
        bytes_accessed=int(4 * B_pad * S + weight_bytes + 4 * B_pad * A * NP))

    out_flat = pl.pallas_call(
        kernel,
        out_shape=jax.ShapeDtypeStruct((B_pad, A * NP), jnp.float32),
        grid=(B_pad // TB,),
        in_specs=in_specs,
        out_specs=out_spec,
        compiler_params=pltpu.CompilerParams(
            dimension_semantics=("parallel",)),
        cost_estimate=cost,
    )(state, *weight_args)

    # Drop padded batch rows and padded atom lanes.
    # TODO(synk): at very large batch this re-slice is an extra HBM pass over a
    # 2.5x-padded slab; fuse it into the consumer if it ever shows up in profiles.
    return out_flat.reshape(B_pad, A, NP)[:B, :, :n_atoms]


def init_params(key, state_size, action_size, n_atoms, hidden=HIDDEN):
    """PyTorch-style uniform(+/- 1/sqrt(fan_in)) init.

    Weights stored transposed as (in_features, out_features); biases (1, out)."""
    def linear(key, fan_in, fan_out):
        kw, kb = jax.random.split(key)
        bound = 1.0 / np.sqrt(fan_in)
        w = jax.random.uniform(kw, (fan_in, fan_out), jnp.float32, -bound, bound)
        b = jax.random.uniform(kb, (1, fan_out), jnp.float32, -bound, bound)
        return w, b

    keys = jax.random.split(key, 6)
    p = {}
    p["w1"], p["b1"] = linear(keys[0], state_size, hidden)
    p["w2"], p["b2"] = linear(keys[1], hidden, hidden)
    p["wv1"], p["bv1"] = linear(keys[2], hidden, hidden)
    p["wv2"], p["bv2"] = linear(keys[3], hidden, n_atoms)
    p["wa1"], p["ba1"] = linear(keys[4], hidden, hidden)
    p["wa2"], p["ba2"] = linear(keys[5], hidden, action_size * n_atoms)
    return p


def reference_forward(state, params, *, action_size, n_atoms):
    """Pure-JAX reference mirroring the PyTorch forward exactly."""
    x = jnp.maximum(state @ params["w1"] + params["b1"], 0.0)
    x = jnp.maximum(x @ params["w2"] + params["b2"], 0.0)
    hv = jnp.maximum(x @ params["wv1"] + params["bv1"], 0.0)
    value = (hv @ params["wv2"] + params["bv2"]).reshape(-1, 1, n_atoms)
    ha = jnp.maximum(x @ params["wa1"] + params["ba1"], 0.0)
    adv = (ha @ params["wa2"] + params["ba2"]).reshape(-1, action_size, n_atoms)
    q = value + adv - adv.mean(axis=1, keepdims=True)
    return jax.nn.softmax(q, axis=-1)


if __name__ == "__main__":
    STATE_SIZE = 32
    ACTION_SIZE = 4
    N_ATOMS = 51
    BATCH = 2

    key = jax.random.PRNGKey(0)
    k_state, k_params = jax.random.split(key)

    state = jax.random.normal(k_state, (BATCH, STATE_SIZE), jnp.float32)
    params = init_params(k_params, STATE_SIZE, ACTION_SIZE, N_ATOMS)

    out = distributional_dqn_forward(
        state, params, action_size=ACTION_SIZE, n_atoms=N_ATOMS)
    out = jax.block_until_ready(out)

    ref = reference_forward(state, params, action_size=ACTION_SIZE, n_atoms=N_ATOMS)
    assert out.shape == (BATCH, ACTION_SIZE, N_ATOMS)
    np.testing.assert_allclose(np.asarray(out), np.asarray(ref), rtol=1e-5, atol=1e-5)
    # Each (batch, action) row of probabilities sums to 1.
    np.testing.assert_allclose(np.asarray(out.sum(-1)),
                               np.ones((BATCH, ACTION_SIZE)), rtol=1e-5, atol=1e-5)

    # Also exercise a batch larger than one tile (ragged -> padded, 2 grid
    # steps) to verify the gridded / pipelined path.
    state_big = jax.random.normal(k_state, (300, STATE_SIZE), jnp.float32)
    out_big = jax.block_until_ready(distributional_dqn_forward(
        state_big, params, action_size=ACTION_SIZE, n_atoms=N_ATOMS))
    ref_big = reference_forward(state_big, params,
                                action_size=ACTION_SIZE, n_atoms=N_ATOMS)
    np.testing.assert_allclose(np.asarray(out_big), np.asarray(ref_big),
                               rtol=1e-5, atol=1e-5)

    print("KERNEL_OK")
</pallas_src>

<mosaic_0001>
module attributes {stable_mosaic.version = 11 : i64} {
  func.func @_dqn_kernel(%arg0: i32, %arg1: memref<8x32xf32, #tpu.memory_space<vmem>>, %arg2: memref<32x128xf32, #tpu.memory_space<vmem>>, %arg3: memref<1x128xf32, #tpu.memory_space<vmem>>, %arg4: memref<128x128xf32, #tpu.memory_space<vmem>>, %arg5: memref<1x128xf32, #tpu.memory_space<vmem>>, %arg6: memref<128x256xf32, #tpu.memory_space<vmem>>, %arg7: memref<1x256xf32, #tpu.memory_space<vmem>>, %arg8: memref<256x640xf32, #tpu.memory_space<vmem>>, %arg9: memref<1x640xf32, #tpu.memory_space<vmem>>, %arg10: memref<8x512xf32, #tpu.memory_space<vmem>>) attributes {dimension_semantics = [#tpu.dimension_semantics<parallel>], iteration_bounds = array<i64: 1>, scalar_prefetch = 0 : i64, scratch_operands = 0 : i64, tpu.core_type = #tpu.core_type<tc>, window_params = [{transform_indices = @transform_0, window_bounds = array<i64: 8, 32>}, {pipeline_mode = #tpu.pipeline_mode<synchronous>, transform_indices = @transform_1, window_bounds = array<i64: 32, 128>}, {pipeline_mode = #tpu.pipeline_mode<synchronous>, transform_indices = @transform_2, window_bounds = array<i64: 1, 128>}, {pipeline_mode = #tpu.pipeline_mode<synchronous>, transform_indices = @transform_3, window_bounds = array<i64: 128, 128>}, {pipeline_mode = #tpu.pipeline_mode<synchronous>, transform_indices = @transform_4, window_bounds = array<i64: 1, 128>}, {pipeline_mode = #tpu.pipeline_mode<synchronous>, transform_indices = @transform_5, window_bounds = array<i64: 128, 256>}, {pipeline_mode = #tpu.pipeline_mode<synchronous>, transform_indices = @transform_6, window_bounds = array<i64: 1, 256>}, {pipeline_mode = #tpu.pipeline_mode<synchronous>, transform_indices = @transform_7, window_bounds = array<i64: 256, 640>}, {pipeline_mode = #tpu.pipeline_mode<synchronous>, transform_indices = @transform_8, window_bounds = array<i64: 1, 640>}, {transform_indices = @transform_9, window_bounds = array<i64: 8, 512>}]} {
    %c0 = arith.constant 0 : index
    %c0_0 = arith.constant 0 : index
    %0 = vector.load %arg1[%c0, %c0_0] : memref<8x32xf32, #tpu.memory_space<vmem>>, vector<8x32xf32>
    %c0_1 = arith.constant 0 : index
    %c0_2 = arith.constant 0 : index
    %1 = vector.load %arg2[%c0_1, %c0_2] : memref<32x128xf32, #tpu.memory_space<vmem>>, vector<32x128xf32>
    %cst = arith.constant dense<0.000000e+00> : vector<8x128xf32>
    %2 = tpu.matmul %0, %1, %cst {dimension_numbers = #tpu.dot_dimension_numbers<[1], [0], [0], [1], [0, 0, 1, 1], [], []>} : vector<8x32xf32>, vector<32x128xf32>, vector<8x128xf32> -> vector<8x128xf32>
    %c0_3 = arith.constant 0 : index
    %c0_4 = arith.constant 0 : index
    %3 = vector.load %arg3[%c0_3, %c0_4] : memref<1x128xf32, #tpu.memory_space<vmem>>, vector<1x128xf32>
    %4 = vector.broadcast %3 : vector<1x128xf32> to vector<8x128xf32>
    %5 = arith.addf %2, %4 : vector<8x128xf32>
    %cst_5 = arith.constant 0.000000e+00 : f32
    %6 = vector.broadcast %cst_5 : f32 to vector<8x128xf32>
    %7 = arith.maximumf %5, %6 : vector<8x128xf32>
    %c0_6 = arith.constant 0 : index
    %c0_7 = arith.constant 0 : index
    %8 = vector.load %arg4[%c0_6, %c0_7] : memref<128x128xf32, #tpu.memory_space<vmem>>, vector<128x128xf32>
    %cst_8 = arith.constant dense<0.000000e+00> : vector<8x128xf32>
    %9 = tpu.matmul %7, %8, %cst_8 {dimension_numbers = #tpu.dot_dimension_numbers<[1], [0], [0], [1], [0, 0, 1, 1], [], []>} : vector<8x128xf32>, vector<128x128xf32>, vector<8x128xf32> -> vector<8x128xf32>
    %c0_9 = arith.constant 0 : index
    %c0_10 = arith.constant 0 : index
    %10 = vector.load %arg5[%c0_9, %c0_10] : memref<1x128xf32, #tpu.memory_space<vmem>>, vector<1x128xf32>
    %11 = vector.broadcast %10 : vector<1x128xf32> to vector<8x128xf32>
    %12 = arith.addf %9, %11 : vector<8x128xf32>
    %cst_11 = arith.constant 0.000000e+00 : f32
    %13 = vector.broadcast %cst_11 : f32 to vector<8x128xf32>
    %14 = arith.maximumf %12, %13 : vector<8x128xf32>
    %c0_12 = arith.constant 0 : index
    %c0_13 = arith.constant 0 : index
    %15 = vector.load %arg6[%c0_12, %c0_13] : memref<128x256xf32, #tpu.memory_space<vmem>>, vector<128x256xf32>
    %cst_14 = arith.constant dense<0.000000e+00> : vector<8x256xf32>
    %16 = tpu.matmul %14, %15, %cst_14 {dimension_numbers = #tpu.dot_dimension_numbers<[1], [0], [0], [1], [0, 0, 1, 1], [], []>} : vector<8x128xf32>, vector<128x256xf32>, vector<8x256xf32> -> vector<8x256xf32>
    %c0_15 = arith.constant 0 : index
    %c0_16 = arith.constant 0 : index
    %17 = vector.load %arg7[%c0_15, %c0_16] : memref<1x256xf32, #tpu.memory_space<vmem>>, vector<1x256xf32>
    %18 = vector.broadcast %17 : vector<1x256xf32> to vector<8x256xf32>
    %19 = arith.addf %16, %18 : vector<8x256xf32>
    %cst_17 = arith.constant 0.000000e+00 : f32
    %20 = vector.broadcast %cst_17 : f32 to vector<8x256xf32>
    %21 = arith.maximumf %19, %20 : vector<8x256xf32>
    %c0_18 = arith.constant 0 : index
    %c0_19 = arith.constant 0 : index
    %22 = vector.load %arg8[%c0_18, %c0_19] : memref<256x640xf32, #tpu.memory_space<vmem>>, vector<256x640xf32>
    %cst_20 = arith.constant dense<0.000000e+00> : vector<8x640xf32>
    %23 = tpu.matmul %21, %22, %cst_20 {dimension_numbers = #tpu.dot_dimension_numbers<[1], [0], [0], [1], [0, 0, 1, 1], [], []>} : vector<8x256xf32>, vector<256x640xf32>, vector<8x640xf32> -> vector<8x640xf32>
    %c0_21 = arith.constant 0 : index
    %c0_22 = arith.constant 0 : index
    %24 = vector.load %arg9[%c0_21, %c0_22] : memref<1x640xf32, #tpu.memory_space<vmem>>, vector<1x640xf32>
    %25 = vector.broadcast %24 : vector<1x640xf32> to vector<8x640xf32>
    %26 = arith.addf %23, %25 : vector<8x640xf32>
    %27 = vector.extract_strided_slice %26 {offsets = [0, 0], sizes = [8, 128], strides = [1, 1]} : vector<8x640xf32> to vector<8x128xf32>
    %28 = vector.extract_strided_slice %26 {offsets = [0, 128], sizes = [8, 128], strides = [1, 1]} : vector<8x640xf32> to vector<8x128xf32>
    %29 = vector.extract_strided_slice %26 {offsets = [0, 256], sizes = [8, 128], strides = [1, 1]} : vector<8x640xf32> to vector<8x128xf32>
    %30 = vector.extract_strided_slice %26 {offsets = [0, 384], sizes = [8, 128], strides = [1, 1]} : vector<8x640xf32> to vector<8x128xf32>
    %31 = vector.extract_strided_slice %26 {offsets = [0, 512], sizes = [8, 128], strides = [1, 1]} : vector<8x640xf32> to vector<8x128xf32>
    %32 = arith.addf %28, %29 : vector<8x128xf32>
    %33 = arith.addf %32, %30 : vector<8x128xf32>
    %34 = arith.addf %33, %31 : vector<8x128xf32>
    %cst_23 = arith.constant 2.500000e-01 : f32
    %35 = vector.broadcast %cst_23 : f32 to vector<8x128xf32>
    %36 = arith.mulf %34, %35 : vector<8x128xf32>
    %37 = arith.addf %27, %28 : vector<8x128xf32>
    %38 = arith.subf %37, %36 : vector<8x128xf32>
    %cst_24 = arith.constant dense<0xFF800000> : vector<8xf32>
    %39 = vector.multi_reduction <maximumf>, %38, %cst_24 [1] : vector<8x128xf32> to vector<8xf32>
    %40 = vector.shape_cast %39 : vector<8xf32> to vector<8x1xf32>
    %41 = vector.broadcast %40 : vector<8x1xf32> to vector<8x128xf32>
    %42 = arith.subf %38, %41 : vector<8x128xf32>
    %43 = math.exp %42 : vector<8x128xf32>
    %cst_25 = arith.constant dense<0.000000e+00> : vector<8xf32>
    %44 = vector.multi_reduction <add>, %43, %cst_25 [1] : vector<8x128xf32> to vector<8xf32>
    %45 = vector.shape_cast %44 : vector<8xf32> to vector<8x1xf32>
    %46 = vector.broadcast %45 : vector<8x1xf32> to vector<8x128xf32>
    %47 = arith.divf %43, %46 : vector<8x128xf32>
    %c0_26 = arith.constant 0 : index
    %c0_27 = arith.constant 0 : index
    %48 = vector.load %arg10[%c0_26, %c0_27] : memref<8x512xf32, #tpu.memory_space<vmem>>, vector<8x128xf32>
    tpu.vector_store %arg10[%c0_26, %c0_27], %47 {strides = array<i32>} : memref<8x512xf32, #tpu.memory_space<vmem>>, vector<8x128xf32>,
    %49 = arith.addf %27, %29 : vector<8x128xf32>
    %50 = arith.subf %49, %36 : vector<8x128xf32>
    %cst_28 = arith.constant dense<0xFF800000> : vector<8xf32>
    %51 = vector.multi_reduction <maximumf>, %50, %cst_28 [1] : vector<8x128xf32> to vector<8xf32>
    %52 = vector.shape_cast %51 : vector<8xf32> to vector<8x1xf32>
    %53 = vector.broadcast %52 : vector<8x1xf32> to vector<8x128xf32>
    %54 = arith.subf %50, %53 : vector<8x128xf32>
    %55 = math.exp %54 : vector<8x128xf32>
    %cst_29 = arith.constant dense<0.000000e+00> : vector<8xf32>
    %56 = vector.multi_reduction <add>, %55, %cst_29 [1] : vector<8x128xf32> to vector<8xf32>
    %57 = vector.shape_cast %56 : vector<8xf32> to vector<8x1xf32>
    %58 = vector.broadcast %57 : vector<8x1xf32> to vector<8x128xf32>
    %59 = arith.divf %55, %58 : vector<8x128xf32>
    %c0_30 = arith.constant 0 : index
    %c128 = arith.constant 128 : index
    %60 = vector.load %arg10[%c0_30, %c128] : memref<8x512xf32, #tpu.memory_space<vmem>>, vector<8x128xf32>
    tpu.vector_store %arg10[%c0_30, %c128], %59 {strides = array<i32>} : memref<8x512xf32, #tpu.memory_space<vmem>>, vector<8x128xf32>,
    %61 = arith.addf %27, %30 : vector<8x128xf32>
    %62 = arith.subf %61, %36 : vector<8x128xf32>
    %cst_31 = arith.constant dense<0xFF800000> : vector<8xf32>
    %63 = vector.multi_reduction <maximumf>, %62, %cst_31 [1] : vector<8x128xf32> to vector<8xf32>
    %64 = vector.shape_cast %63 : vector<8xf32> to vector<8x1xf32>
    %65 = vector.broadcast %64 : vector<8x1xf32> to vector<8x128xf32>
    %66 = arith.subf %62, %65 : vector<8x128xf32>
    %67 = math.exp %66 : vector<8x128xf32>
    %cst_32 = arith.constant dense<0.000000e+00> : vector<8xf32>
    %68 = vector.multi_reduction <add>, %67, %cst_32 [1] : vector<8x128xf32> to vector<8xf32>
    %69 = vector.shape_cast %68 : vector<8xf32> to vector<8x1xf32>
    %70 = vector.broadcast %69 : vector<8x1xf32> to vector<8x128xf32>
    %71 = arith.divf %67, %70 : vector<8x128xf32>
    %c0_33 = arith.constant 0 : index
    %c256 = arith.constant 256 : index
    %72 = vector.load %arg10[%c0_33, %c256] : memref<8x512xf32, #tpu.memory_space<vmem>>, vector<8x128xf32>
    tpu.vector_store %arg10[%c0_33, %c256], %71 {strides = array<i32>} : memref<8x512xf32, #tpu.memory_space<vmem>>, vector<8x128xf32>,
    %73 = arith.addf %27, %31 : vector<8x128xf32>
    %74 = arith.subf %73, %36 : vector<8x128xf32>
    %cst_34 = arith.constant dense<0xFF800000> : vector<8xf32>
    %75 = vector.multi_reduction <maximumf>, %74, %cst_34 [1] : vector<8x128xf32> to vector<8xf32>
    %76 = vector.shape_cast %75 : vector<8xf32> to vector<8x1xf32>
    %77 = vector.broadcast %76 : vector<8x1xf32> to vector<8x128xf32>
    %78 = arith.subf %74, %77 : vector<8x128xf32>
    %79 = math.exp %78 : vector<8x128xf32>
    %cst_35 = arith.constant dense<0.000000e+00> : vector<8xf32>
    %80 = vector.multi_reduction <add>, %79, %cst_35 [1] : vector<8x128xf32> to vector<8xf32>
    %81 = vector.shape_cast %80 : vector<8xf32> to vector<8x1xf32>
    %82 = vector.broadcast %81 : vector<8x1xf32> to vector<8x128xf32>
    %83 = arith.divf %79, %82 : vector<8x128xf32>
    %c0_36 = arith.constant 0 : index
    %c384 = arith.constant 384 : index
    %84 = vector.load %arg10[%c0_36, %c384] : memref<8x512xf32, #tpu.memory_space<vmem>>, vector<8x128xf32>
    tpu.vector_store %arg10[%c0_36, %c384], %83 {strides = array<i32>} : memref<8x512xf32, #tpu.memory_space<vmem>>, vector<8x128xf32>,
    return
  }
  func.func @transform_0(%arg0: i32) -> (i32, i32) {
    %c0_i32 = arith.constant 0 : i32
    %c0_i32_0 = arith.constant 0 : i32
    return %arg0, %c0_i32 : i32, i32
  }
  func.func @transform_1(%arg0: i32) -> (i32, i32) {
    %c0_i32 = arith.constant 0 : i32
    %c0_i32_0 = arith.constant 0 : i32
    %c0_i32_1 = arith.constant 0 : i32
    return %c0_i32, %c0_i32_0 : i32, i32
  }
  func.func @transform_2(%arg0: i32) -> (i32, i32) {
    %c0_i32 = arith.constant 0 : i32
    %c0_i32_0 = arith.constant 0 : i32
    %c0_i32_1 = arith.constant 0 : i32
    return %c0_i32, %c0_i32_0 : i32, i32
  }
  func.func @transform_3(%arg0: i32) -> (i32, i32) {
    %c0_i32 = arith.constant 0 : i32
    %c0_i32_0 = arith.constant 0 : i32
    %c0_i32_1 = arith.constant 0 : i32
    return %c0_i32, %c0_i32_0 : i32, i32
  }
  func.func @transform_4(%arg0: i32) -> (i32, i32) {
    %c0_i32 = arith.constant 0 : i32
    %c0_i32_0 = arith.constant 0 : i32
    %c0_i32_1 = arith.constant 0 : i32
    return %c0_i32, %c0_i32_0 : i32, i32
  }
  func.func @transform_5(%arg0: i32) -> (i32, i32) {
    %c0_i32 = arith.constant 0 : i32
    %c0_i32_0 = arith.constant 0 : i32
    %c0_i32_1 = arith.constant 0 : i32
    return %c0_i32, %c0_i32_0 : i32, i32
  }
  func.func @transform_6(%arg0: i32) -> (i32, i32) {
    %c0_i32 = arith.constant 0 : i32
    %c0_i32_0 = arith.constant 0 : i32
    %c0_i32_1 = arith.constant 0 : i32
    return %c0_i32, %c0_i32_0 : i32, i32
  }
  func.func @transform_7(%arg0: i32) -> (i32, i32) {
    %c0_i32 = arith.constant 0 : i32
    %c0_i32_0 = arith.constant 0 : i32
    %c0_i32_1 = arith.constant 0 : i32
    return %c0_i32, %c0_i32_0 : i32, i32
  }
  func.func @transform_8(%arg0: i32) -> (i32, i32) {
    %c0_i32 = arith.constant 0 : i32
    %c0_i32_0 = arith.constant 0 : i32
    %c0_i32_1 = arith.constant 0 : i32
    return %c0_i32, %c0_i32_0 : i32, i32
  }
  func.func @transform_9(%arg0: i32) -> (i32, i32) {
    %c0_i32 = arith.constant 0 : i32
    %c0_i32_0 = arith.constant 0 : i32
    return %arg0, %c0_i32 : i32, i32
  }
}

</mosaic_0001>

<llo_original>
// kernel: tpu_custom_call.1
$region0: #{tpu_custom_call.1}
  #allocation0 [shape = 'u32[]', space=smem, size = 0x4, offset = 0x4, fixed_abs, tag = 'smem constant byte address 0x4 - core index']
  #allocation1 [shape = 'u32[144,128]{1,0:T(1,128)}', space=vmem, size = 0x12000, scoped, tag = 'internal scratch']
  %s0 = inlined_call_operand.hbm [shape: f32[8,32], index: 0, kind: input, shape index: {}]
  %s1 = inlined_call_operand.hbm [shape: f32[32,128], index: 1, kind: input, shape index: {}]
  %s2 = inlined_call_operand.vmem [shape: f32[1,128], index: 2, kind: input, shape index: {}]
  %s3 = inlined_call_operand.hbm [shape: f32[128,128], index: 3, kind: input, shape index: {}]
  %s4 = inlined_call_operand.vmem [shape: f32[1,128], index: 4, kind: input, shape index: {}]
  %s5 = inlined_call_operand.hbm [shape: f32[128,256], index: 5, kind: input, shape index: {}]
  %s6 = inlined_call_operand.vmem [shape: f32[1,256], index: 6, kind: input, shape index: {}]
  %s7 = inlined_call_operand.hbm [shape: f32[256,640], index: 7, kind: input, shape index: {}]
  %s8 = inlined_call_operand.vmem [shape: f32[1,640], index: 8, kind: input, shape index: {}]
  %s9 = inlined_call_operand.hbm [shape: f32[8,512], index: 9, kind: output, shape index: {}]
  %s10 = sld [smem:[#allocation0]]
  $region66: #{tpu_custom_call.1} parent=0
    _
  %s12 = ssub.s32 1, %s10
  %s13 = scalar_select 0, %s12, %s10
  $region1: #{tpu_custom_call.1} parent=0
    #allocation2 [shape = 'u8[4096]{0}', space=vmem, size = 0x1000, scoped, tag = 'input window, operand 0, single buffered']
    #allocation3 [shape = 's32[1]{0}', space=sflag, size = 0x4, scoped, tag = 'scoped memory for tpu_custom_call.1']
    #allocation4 [shape = 's32[1]{0}', space=sflag, size = 0x4, scoped, tag = 'scoped memory for tpu_custom_call.1']
    #allocation5 [shape = 'u8[16384]{0}', space=vmem, size = 0x4000, scoped, tag = 'input window, operand 1, single buffered']
    #allocation6 [shape = 's32[1]{0}', space=sflag, size = 0x4, scoped, tag = 'scoped memory for tpu_custom_call.1']
    #allocation7 [shape = 'u8[65536]{0}', space=vmem, size = 0x10000, scoped, tag = 'input window, operand 3, single buffered']
    #allocation8 [shape = 'u8[131072]{0}', space=vmem, size = 0x20000, scoped, tag = 'input window, operand 5, single buffered']
    #allocation9 [shape = 's32[1]{0}', space=sflag, size = 0x4, scoped, tag = 'scoped memory for tpu_custom_call.1']
    #allocation10 [shape = 'u8[655360]{0}', space=vmem, size = 0xa0000, scoped, tag = 'input window, operand 7, single buffered']
    #allocation11 [shape = 'u8[16384]{0}', space=vmem, size = 0x4000, scoped, tag = 'output window, operand 0, single buffered']
    %14 = vsyncpa [#allocation3], 0
    %15 = vsyncpa [#allocation6], 0
    %16 = vsyncpa [#allocation9], 0
    %17 = vsyncpa [#allocation4], 0
    // Predicated region
    $region2: #{tpu_custom_call.1} parent=1 // pred_check
      _
    $region3: #{tpu_custom_call.1} parent=1 // pred_check_branch
      %19 = sbr.rel (0) target = $region5
    $region4: #{tpu_custom_call.1} parent=1 // pred_region
      %s21 = ssub.s32 128, 128
      %22 = vsyncadd [#allocation3], %s21
      %s24 = sshll.u32 [#allocation2], 4
      %s25 = int_to_ptr.vmem [resolvable:$true] %s24
      %27 = dma.hbm_to_vmem [thread:$0]  %s0, 128, %s25, [#allocation3]
    $region5: #{tpu_custom_call.1} parent=1 // pred_fallthru
      _
    // Predicated region
    $region6: #{tpu_custom_call.1} parent=1 // pred_check
      _
    $region7: #{tpu_custom_call.1} parent=1 // pred_check_branch
      %29 = sbr.rel (0) target = $region9
    $region8: #{tpu_custom_call.1} parent=1 // pred_region
      %s31 = ssub.s32 512, 512
      %32 = vsyncadd [#allocation6], %s31
      %s33 = sshll.u32 [#allocation5], 4
      %s34 = int_to_ptr.vmem [resolvable:$true] %s33
      %39 = dma.hbm_to_vmem [thread:$0]  %s1, 512, %s34, [#allocation6], 128, 128, 8
    $region9: #{tpu_custom_call.1} parent=1 // pred_fallthru
      _
    // Predicated region
    $region10: #{tpu_custom_call.1} parent=1 // pred_check
      _
    $region11: #{tpu_custom_call.1} parent=1 // pred_check_branch
      %41 = sbr.rel (0) target = $region13
    $region12: #{tpu_custom_call.1} parent=1 // pred_region
      _
    $region13: #{tpu_custom_call.1} parent=1 // pred_fallthru
      _
    // Predicated region
    $region14: #{tpu_custom_call.1} parent=1 // pred_check
      _
    $region15: #{tpu_custom_call.1} parent=1 // pred_check_branch
      %43 = sbr.rel (0) target = $region17
    $region16: #{tpu_custom_call.1} parent=1 // pred_region
      %s45 = ssub.s32 2048, 2048
      %46 = vsyncadd [#allocation6], %s45
      %s47 = sshll.u32 [#allocation7], 4
      %s48 = int_to_ptr.vmem [resolvable:$true] %s47
      %53 = dma.hbm_to_vmem [thread:$0]  %s3, 2048, %s48, [#allocation6], 128, 128, 8
    $region17: #{tpu_custom_call.1} parent=1 // pred_fallthru
      _
    // Predicated region
    $region18: #{tpu_custom_call.1} parent=1 // pred_check
      _
    $region19: #{tpu_custom_call.1} parent=1 // pred_check_branch
      %55 = sbr.rel (0) target = $region21
    $region20: #{tpu_custom_call.1} parent=1 // pred_region
      _
    $region21: #{tpu_custom_call.1} parent=1 // pred_fallthru
      _
    // Predicated region
    $region22: #{tpu_custom_call.1} parent=1 // pred_check
      _
    $region23: #{tpu_custom_call.1} parent=1 // pred_check_branch
      %57 = sbr.rel (0) target = $region25
    $region24: #{tpu_custom_call.1} parent=1 // pred_region
      %s59 = ssub.s32 4096, 4096
      %60 = vsyncadd [#allocation9], %s59
      %s61 = sshll.u32 [#allocation8], 4
      %s62 = int_to_ptr.vmem [resolvable:$true] %s61
      %67 = dma.hbm_to_vmem [thread:$0]  %s5, 4096, %s62, [#allocation9], 256, 256, 16
    $region25: #{tpu_custom_call.1} parent=1 // pred_fallthru
      _
    // Predicated region
    $region26: #{tpu_custom_call.1} parent=1 // pred_check
      _
    $region27: #{tpu_custom_call.1} parent=1 // pred_check_branch
      %69 = sbr.rel (0) target = $region29
    $region28: #{tpu_custom_call.1} parent=1 // pred_region
      _
    $region29: #{tpu_custom_call.1} parent=1 // pred_fallthru
      _
    // Predicated region
    $region30: #{tpu_custom_call.1} parent=1 // pred_check
      _
    $region31: #{tpu_custom_call.1} parent=1 // pred_check_branch
      %71 = sbr.rel (0) target = $region33
    $region32: #{tpu_custom_call.1} parent=1 // pred_region
      %s73 = ssub.s32 20480, 20480
      %74 = vsyncadd [#allocation9], %s73
      %s75 = sshll.u32 [#allocation10], 4
      %s76 = int_to_ptr.vmem [resolvable:$true] %s75
      %81 = dma.hbm_to_vmem [thread:$0]  %s7, 20480, %s76, [#allocation9], 640, 640, 40
    $region33: #{tpu_custom_call.1} parent=1 // pred_fallthru
      _
    // Predicated region
    $region34: #{tpu_custom_call.1} parent=1 // pred_check
      _
    $region35: #{tpu_custom_call.1} parent=1 // pred_check_branch
      %83 = sbr.rel (0) target = $region37
    $region36: #{tpu_custom_call.1} parent=1 // pred_region
      _
    $region37: #{tpu_custom_call.1} parent=1 // pred_fallthru
      _
    // Predicated region
    $region38: #{tpu_custom_call.1} parent=1 // pred_check
      _
    $region39: #{tpu_custom_call.1} parent=1 // pred_check_branch
      %85 = sbr.rel (0) target = $region41
    $region40: #{tpu_custom_call.1} parent=1 // pred_region
      %86 = dma.done [#allocation3], 128
    $region41: #{tpu_custom_call.1} parent=1 // pred_fallthru
      _
    // Predicated region
    $region42: #{tpu_custom_call.1} parent=1 // pred_check
      _
    $region43: #{tpu_custom_call.1} parent=1 // pred_check_branch
      %88 = sbr.rel (0) target = $region45
    $region44: #{tpu_custom_call.1} parent=1 // pred_region
      %89 = dma.done [#allocation6], 512
    $region45: #{tpu_custom_call.1} parent=1 // pred_fallthru
      _
    // Predicated region
    $region46: #{tpu_custom_call.1} parent=1 // pred_check
      _
    $region47: #{tpu_custom_call.1} parent=1 // pred_check_branch
      %91 = sbr.rel (0) target = $region49
    $region48: #{tpu_custom_call.1} parent=1 // pred_region
      %92 = dma.done [#allocation6], 2048
    $region49: #{tpu_custom_call.1} parent=1 // pred_fallthru
      _
    // Predicated region
    $region50: #{tpu_custom_call.1} parent=1 // pred_check
      _
    $region51: #{tpu_custom_call.1} parent=1 // pred_check_branch
      %94 = sbr.rel (0) target = $region53
    $region52: #{tpu_custom_call.1} parent=1 // pred_region
      %95 = dma.done [#allocation9], 4096
    $region53: #{tpu_custom_call.1} parent=1 // pred_fallthru
      _
    // Predicated region
    $region54: #{tpu_custom_call.1} parent=1 // pred_check
      _
    $region55: #{tpu_custom_call.1} parent=1 // pred_check_branch
      %97 = sbr.rel (0) target = $region57
    $region56: #{tpu_custom_call.1} parent=1 // pred_region
      %98 = dma.done [#allocation9], 20480
    $region57: #{tpu_custom_call.1} parent=1 // pred_fallthru
      _
    %v99 = vld [vmem:[#allocation2] sm:$0xff]
    %v100 = vld [vmem:[#allocation5] sm:$0xff]
    %v101 = vld [vmem:[#allocation5 + $0x8] sm:$0xff]
    %v102 = vld [vmem:[#allocation5 + $0x10] sm:$0xff]
    %v103 = vld [vmem:[#allocation5 + $0x18] sm:$0xff]
    %v104 = vld [vmem:[%s2] sm:$0x1]
    %v106 = vlaneseq
    %v107 = vshrl.u32 %v106, 7
    %v108 = vsub.s32 0, %v107
    %v109 = vrot.slane %v104, %v108
    %vm111 = vcmask 261120
    %v113 = vsel %vm111, %v99, 0
    %115 = vmatprep.subr.mxu0 0.0
    %116 = vmatpush1.msra.mxu0 0.0
    %117 = vmatprep.subr.mxu0 0.0
    %118 = vmatpush1.msra.mxu0 0.0
    %119 = vmatprep.subr.mxu0 0.0
    %120 = vmatpush1.msra.mxu0 0.0
    %121 = vmatprep.subr.mxu0 0.0
    %122 = vmatpush1.msra.mxu0 0.0
    %123 = vmatprep.subr.mxu0 0.0
    %124 = vmatpush1.msra.mxu0 0.0
    %125 = vmatprep.subr.mxu0 0.0
    %126 = vmatpush1.msra.mxu0 0.0
    %127 = vmatprep.subr.mxu0 0.0
    %128 = vmatpush1.msra.mxu0 0.0
    %129 = vmatprep.subr.mxu0 0.0
    %130 = vmatpush1.msra.mxu0 0.0
    %131 = vmatprep.subr.mxu0 0.0
    %132 = vmatpush1.msra.mxu0 0.0
    %133 = vmatprep.subr.mxu0 0.0
    %134 = vmatpush1.msra.mxu0 0.0
    %135 = vmatprep.subr.mxu0 0.0
    %136 = vmatpush1.msra.mxu0 0.0
    %137 = vmatprep.subr.mxu0 0.0
    %138 = vmatpush1.msra.mxu0 0.0
    %139 = vmatprep.subr.mxu0 0.0
    %140 = vmatpush1.msra.mxu0 %v103
    %141 = vmatprep.subr.mxu0 0.0
    %142 = vmatpush1.msra.mxu0 %v102
    %143 = vmatprep.subr.mxu0 0.0
    %144 = vmatpush1.msra.mxu0 %v101
    %145 = vmatprep.subr.mxu0 0.0
    %146 = vmatpush1.msra.mxu0 %v100
    %147 = vmatprep.subr.mxu0 0.0
    %148 = vmatpush2.msra.mxu0 0.0
    %149 = vmatprep.subr.mxu0 0.0
    %150 = vmatpush2.msra.mxu0 0.0
    %151 = vmatprep.subr.mxu0 0.0
    %152 = vmatpush2.msra.mxu0 0.0
    %153 = vmatprep.subr.mxu0 0.0
    %154 = vmatpush2.msra.mxu0 0.0
    %155 = vmatprep.subr.mxu0 0.0
    %156 = vmatpush2.msra.mxu0 0.0
    %157 = vmatprep.subr.mxu0 0.0
    %158 = vmatpush2.msra.mxu0 0.0
    %159 = vmatprep.subr.mxu0 0.0
    %160 = vmatpush2.msra.mxu0 0.0
    %161 = vmatprep.subr.mxu0 0.0
    %162 = vmatpush2.msra.mxu0 0.0
    %163 = vmatprep.subr.mxu0 0.0
    %164 = vmatpush2.msra.mxu0 0.0
    %165 = vmatprep.subr.mxu0 0.0
    %166 = vmatpush2.msra.mxu0 0.0
    %167 = vmatprep.subr.mxu0 0.0
    %168 = vmatpush2.msra.mxu0 0.0
    %169 = vmatprep.subr.mxu0 0.0
    %170 = vmatpush2.msra.mxu0 0.0
    %171 = vmatprep.subr.mxu0 0.0
    %172 = vmatpush2.msra.mxu0 0.0
    %173 = vmatprep.subr.mxu0 0.0
    %174 = vmatpush2.msra.mxu0 0.0
    %175 = vmatprep.subr.mxu0 0.0
    %176 = vmatpush2.msra.mxu0 0.0
    %177 = vmatprep.subr.mxu0 0.0
    %178 = vmatpush2.msra.mxu0 0.0
    %179 = vmatprep.mubr.f32.mxu0 0.0
    %180 = vmatmul.mubr.f32.gmra.mxu0 %v113
    %v181 = vpop.f32.mrf.mxu0
    %v182 = vadd.f32 %v109, %v181
    %v183 = vpop.f32.mrf.mxu0
    %184 = vdwg.mxu0
    %v185 = vmax.f32 %v182, 0.0
    %v186 = vld [vmem:[#allocation7] sm:$0xff]
    %v187 = vld [vmem:[#allocation7 + $0x8] sm:$0xff]
    %v188 = vld [vmem:[#allocation7 + $0x10] sm:$0xff]
    %v189 = vld [vmem:[#allocation7 + $0x18] sm:$0xff]
    %v190 = vld [vmem:[#allocation7 + $0x20] sm:$0xff]
    %v191 = vld [vmem:[#allocation7 + $0x28] sm:$0xff]
    %v192 = vld [vmem:[#allocation7 + $0x30] sm:$0xff]
    %v193 = vld [vmem:[#allocation7 + $0x38] sm:$0xff]
    %v194 = vld [vmem:[#allocation7 + $0x40] sm:$0xff]
    %v195 = vld [vmem:[#allocation7 + $0x48] sm:$0xff]
    %v196 = vld [vmem:[#allocation7 + $0x50] sm:$0xff]
    %v197 = vld [vmem:[#allocation7 + $0x58] sm:$0xff]
    %v198 = vld [vmem:[#allocation7 + $0x60] sm:$0xff]
    %v199 = vld [vmem:[#allocation7 + $0x68] sm:$0xff]
    %v200 = vld [vmem:[#allocation7 + $0x70] sm:$0xff]
    %v201 = vld [vmem:[#allocation7 + $0x78] sm:$0xff]
    %v202 = vld [vmem:[%s4] sm:$0x1]
    %v204 = vlaneseq
    %v205 = vshrl.u32 %v204, 7
    %v206 = vsub.s32 0, %v205
    %v207 = vrot.slane %v202, %v206
    %209 = vmatprep.subr.mxu0 0.0
    %210 = vmatpush1.msra.mxu0 %v201
    %211 = vmatprep.subr.mxu0 0.0
    %212 = vmatpush1.msra.mxu0 %v200
    %213 = vmatprep.subr.mxu0 0.0
    %214 = vmatpush1.msra.mxu0 %v199
    %215 = vmatprep.subr.mxu0 0.0
    %216 = vmatpush1.msra.mxu0 %v198
    %217 = vmatprep.subr.mxu0 0.0
    %218 = vmatpush1.msra.mxu0 %v197
    %219 = vmatprep.subr.mxu0 0.0
    %220 = vmatpush1.msra.mxu0 %v196
    %221 = vmatprep.subr.mxu0 0.0
    %222 = vmatpush1.msra.mxu0 %v195
    %223 = vmatprep.subr.mxu0 0.0
    %224 = vmatpush1.msra.mxu0 %v194
    %225 = vmatprep.subr.mxu0 0.0
    %226 = vmatpush1.msra.mxu0 %v193
    %227 = vmatprep.subr.mxu0 0.0
    %228 = vmatpush1.msra.mxu0 %v192
    %229 = vmatprep.subr.mxu0 0.0
    %230 = vmatpush1.msra.mxu0 %v191
    %231 = vmatprep.subr.mxu0 0.0
    %232 = vmatpush1.msra.mxu0 %v190
    %233 = vmatprep.subr.mxu0 0.0
    %234 = vmatpush1.msra.mxu0 %v189
    %235 = vmatprep.subr.mxu0 0.0
    %236 = vmatpush1.msra.mxu0 %v188
    %237 = vmatprep.subr.mxu0 0.0
    %238 = vmatpush1.msra.mxu0 %v187
    %239 = vmatprep.subr.mxu0 0.0
    %240 = vmatpush1.msra.mxu0 %v186
    %241 = vmatprep.subr.mxu0 0.0
    %242 = vmatpush2.msra.mxu0 0.0
    %243 = vmatprep.subr.mxu0 0.0
    %244 = vmatpush2.msra.mxu0 0.0
    %245 = vmatprep.subr.mxu0 0.0
    %246 = vmatpush2.msra.mxu0 0.0
    %247 = vmatprep.subr.mxu0 0.0
    %248 = vmatpush2.msra.mxu0 0.0
    %249 = vmatprep.subr.mxu0 0.0
    %250 = vmatpush2.msra.mxu0 0.0
    %251 = vmatprep.subr.mxu0 0.0
    %252 = vmatpush2.msra.mxu0 0.0
    %253 = vmatprep.subr.mxu0 0.0
    %254 = vmatpush2.msra.mxu0 0.0
    %255 = vmatprep.subr.mxu0 0.0
    %256 = vmatpush2.msra.mxu0 0.0
    %257 = vmatprep.subr.mxu0 0.0
    %258 = vmatpush2.msra.mxu0 0.0
    %259 = vmatprep.subr.mxu0 0.0
    %260 = vmatpush2.msra.mxu0 0.0
    %261 = vmatprep.subr.mxu0 0.0
    %262 = vmatpush2.msra.mxu0 0.0
    %263 = vmatprep.subr.mxu0 0.0
    %264 = vmatpush2.msra.mxu0 0.0
    %265 = vmatprep.subr.mxu0 0.0
    %266 = vmatpush2.msra.mxu0 0.0
    %267 = vmatprep.subr.mxu0 0.0
    %268 = vmatpush2.msra.mxu0 0.0
    %269 = vmatprep.subr.mxu0 0.0
    %270 = vmatpush2.msra.mxu0 0.0
    %271 = vmatprep.subr.mxu0 0.0
    %272 = vmatpush2.msra.mxu0 0.0
    %273 = vmatprep.mubr.f32.mxu0 0.0
    %274 = vmatmul.mubr.f32.gmra.mxu0 %v185
    %v275 = vpop.f32.mrf.mxu0
    %v276 = vadd.f32 %v207, %v275
    %v277 = vpop.f32.mrf.mxu0
    %278 = vdwg.mxu0
    %v279 = vmax.f32 %v276, 0.0
    %v280 = vld [vmem:[#allocation8] sm:$0xff]
    %v281 = vld [vmem:[#allocation8 + $0x8] sm:$0xff]
    %v282 = vld [vmem:[#allocation8 + $0x10] sm:$0xff]
    %v283 = vld [vmem:[#allocation8 + $0x18] sm:$0xff]
    %v284 = vld [vmem:[#allocation8 + $0x20] sm:$0xff]
    %v285 = vld [vmem:[#allocation8 + $0x28] sm:$0xff]
    %v286 = vld [vmem:[#allocation8 + $0x30] sm:$0xff]
    %v287 = vld [vmem:[#allocation8 + $0x38] sm:$0xff]
    %v288 = vld [vmem:[#allocation8 + $0x40] sm:$0xff]
    %v289 = vld [vmem:[#allocation8 + $0x48] sm:$0xff]
    %v290 = vld [vmem:[#allocation8 + $0x50] sm:$0xff]
    %v291 = vld [vmem:[#allocation8 + $0x58] sm:$0xff]
    %v292 = vld [vmem:[#allocation8 + $0x60] sm:$0xff]
    %v293 = vld [vmem:[#allocation8 + $0x68] sm:$0xff]
    %v294 = vld [vmem:[#allocation8 + $0x70] sm:$0xff]
    %v295 = vld [vmem:[#allocation8 + $0x78] sm:$0xff]
    %v296 = vld [vmem:[#allocation8 + $0x80] sm:$0xff]
    %v297 = vld [vmem:[#allocation8 + $0x88] sm:$0xff]
    %v298 = vld [vmem:[#allocation8 + $0x90] sm:$0xff]
    %v299 = vld [vmem:[#allocation8 + $0x98] sm:$0xff]
    %v300 = vld [vmem:[#allocation8 + $0xa0] sm:$0xff]
    %v301 = vld [vmem:[#allocation8 + $0xa8] sm:$0xff]
    %v302 = vld [vmem:[#allocation8 + $0xb0] sm:$0xff]
    %v303 = vld [vmem:[#allocation8 + $0xb8] sm:$0xff]
    %v304 = vld [vmem:[#allocation8 + $0xc0] sm:$0xff]
    %v305 = vld [vmem:[#allocation8 + $0xc8] sm:$0xff]
    %v306 = vld [vmem:[#allocation8 + $0xd0] sm:$0xff]
    %v307 = vld [vmem:[#allocation8 + $0xd8] sm:$0xff]
    %v308 = vld [vmem:[#allocation8 + $0xe0] sm:$0xff]
    %v309 = vld [vmem:[#allocation8 + $0xe8] sm:$0xff]
    %v310 = vld [vmem:[#allocation8 + $0xf0] sm:$0xff]
    %v311 = vld [vmem:[#allocation8 + $0xf8] sm:$0xff]
    %v312 = vld [vmem:[%s6] sm:$0x3]
    %v314 = vlaneseq
    %v315 = vshrl.u32 %v314, 7
    %v316 = vsub.s32 0, %v315
    %v317 = vrot.slane %v312, %v316
    %v318 = vlaneseq
    %v319 = vshrl.u32 %v318, 7
    %v320 = vsub.s32 1, %v319
    %v321 = vrot.slane %v312, %v320
    %324 = vmatprep.subr.mxu0 %v311
    %325 = vmatpush1.msra.mxu0 %v310
    %326 = vmatprep.subr.mxu0 %v309
    %327 = vmatpush1.msra.mxu0 %v308
    %328 = vmatprep.subr.mxu0 %v307
    %329 = vmatpush1.msra.mxu0 %v306
    %330 = vmatprep.subr.mxu0 %v305
    %331 = vmatpush1.msra.mxu0 %v304
    %332 = vmatprep.subr.mxu0 %v303
    %333 = vmatpush1.msra.mxu0 %v302
    %334 = vmatprep.subr.mxu0 %v301
    %335 = vmatpush1.msra.mxu0 %v300
    %336 = vmatprep.subr.mxu0 %v299
    %337 = vmatpush1.msra.mxu0 %v298
    %338 = vmatprep.subr.mxu0 %v297
    %339 = vmatpush1.msra.mxu0 %v296
    %340 = vmatprep.subr.mxu0 %v295
    %341 = vmatpush1.msra.mxu0 %v294
    %342 = vmatprep.subr.mxu0 %v293
    %343 = vmatpush1.msra.mxu0 %v292
    %344 = vmatprep.subr.mxu0 %v291
    %345 = vmatpush1.msra.mxu0 %v290
    %346 = vmatprep.subr.mxu0 %v289
    %347 = vmatpush1.msra.mxu0 %v288
    %348 = vmatprep.subr.mxu0 %v287
    %349 = vmatpush1.msra.mxu0 %v286
    %350 = vmatprep.subr.mxu0 %v285
    %351 = vmatpush1.msra.mxu0 %v284
    %352 = vmatprep.subr.mxu0 %v283
    %353 = vmatpush1.msra.mxu0 %v282
    %354 = vmatprep.subr.mxu0 %v281
    %355 = vmatpush1.msra.mxu0 %v280
    %356 = vmatprep.subr.mxu0 0.0
    %357 = vmatpush2.msra.mxu0 0.0
    %358 = vmatprep.subr.mxu0 0.0
    %359 = vmatpush2.msra.mxu0 0.0
    %360 = vmatprep.subr.mxu0 0.0
    %361 = vmatpush2.msra.mxu0 0.0
    %362 = vmatprep.subr.mxu0 0.0
    %363 = vmatpush2.msra.mxu0 0.0
    %364 = vmatprep.subr.mxu0 0.0
    %365 = vmatpush2.msra.mxu0 0.0
    %366 = vmatprep.subr.mxu0 0.0
    %367 = vmatpush2.msra.mxu0 0.0
    %368 = vmatprep.subr.mxu0 0.0
    %369 = vmatpush2.msra.mxu0 0.0
    %370 = vmatprep.subr.mxu0 0.0
    %371 = vmatpush2.msra.mxu0 0.0
    %372 = vmatprep.subr.mxu0 0.0
    %373 = vmatpush2.msra.mxu0 0.0
    %374 = vmatprep.subr.mxu0 0.0
    %375 = vmatpush2.msra.mxu0 0.0
    %376 = vmatprep.subr.mxu0 0.0
    %377 = vmatpush2.msra.mxu0 0.0
    %378 = vmatprep.subr.mxu0 0.0
    %379 = vmatpush2.msra.mxu0 0.0
    %380 = vmatprep.subr.mxu0 0.0
    %381 = vmatpush2.msra.mxu0 0.0
    %382 = vmatprep.subr.mxu0 0.0
    %383 = vmatpush2.msra.mxu0 0.0
    %384 = vmatprep.subr.mxu0 0.0
    %385 = vmatpush2.msra.mxu0 0.0
    %386 = vmatprep.subr.mxu0 0.0
    %387 = vmatpush2.msra.mxu0 0.0
    %388 = vmatprep.mubr.f32.mxu0 0.0
    %389 = vmatmul.mubr.f32.gmra.mxu0 %v279
    %v390 = vpop.f32.mrf.mxu0
    %v391 = vadd.f32 %v317, %v390
    %v392 = vpop.f32.mrf.mxu0
    %v393 = vadd.f32 %v321, %v392
    %394 = vdwg.mxu0
    %v395 = vmax.f32 %v391, 0.0
    %v396 = vmax.f32 %v393, 0.0
    %v397 = vld [vmem:[#allocation10] sm:$0xff]
    %v398 = vld [vmem:[#allocation10 + $0x8] sm:$0xff]
    %v399 = vld [vmem:[#allocation10 + $0x10] sm:$0xff]
    %v400 = vld [vmem:[#allocation10 + $0x18] sm:$0xff]
    %v401 = vld [vmem:[#allocation10 + $0x20] sm:$0xff]
    %v402 = vld [vmem:[#allocation10 + $0x28] sm:$0xff]
    %v403 = vld [vmem:[#allocation10 + $0x30] sm:$0xff]
    %v404 = vld [vmem:[#allocation10 + $0x38] sm:$0xff]
    %v405 = vld [vmem:[#allocation10 + $0x40] sm:$0xff]
    %v406 = vld [vmem:[#allocation10 + $0x48] sm:$0xff]
    %v407 = vld [vmem:[#allocation10 + $0x50] sm:$0xff]
    %v408 = vld [vmem:[#allocation10 + $0x58] sm:$0xff]
    %v409 = vld [vmem:[#allocation10 + $0x60] sm:$0xff]
    %v410 = vld [vmem:[#allocation10 + $0x68] sm:$0xff]
    %v411 = vld [vmem:[#allocation10 + $0x70] sm:$0xff]
    %v412 = vld [vmem:[#allocation10 + $0x78] sm:$0xff]
    %v413 = vld [vmem:[#allocation10 + $0x80] sm:$0xff]
    %v414 = vld [vmem:[#allocation10 + $0x88] sm:$0xff]
    %v415 = vld [vmem:[#allocation10 + $0x90] sm:$0xff]
    %v416 = vld [vmem:[#allocation10 + $0x98] sm:$0xff]
    %v417 = vld [vmem:[#allocation10 + $0xa0] sm:$0xff]
    %v418 = vld [vmem:[#allocation10 + $0xa8] sm:$0xff]
    %v419 = vld [vmem:[#allocation10 + $0xb0] sm:$0xff]
    %v420 = vld [vmem:[#allocation10 + $0xb8] sm:$0xff]
    %v421 = vld [vmem:[#allocation10 + $0xc0] sm:$0xff]
    %v422 = vld [vmem:[#allocation10 + $0xc8] sm:$0xff]
    %v423 = vld [vmem:[#allocation10 + $0xd0] sm:$0xff]
    %v424 = vld [vmem:[#allocation10 + $0xd8] sm:$0xff]
    %v425 = vld [vmem:[#allocation10 + $0xe0] sm:$0xff]
    %v426 = vld [vmem:[#allocation10 + $0xe8] sm:$0xff]
    %v427 = vld [vmem:[#allocation10 + $0xf0] sm:$0xff]
    %v428 = vld [vmem:[#allocation10 + $0xf8] sm:$0xff]
    %v429 = vld [vmem:[#allocation10 + $0x100] sm:$0xff]
    %v430 = vld [vmem:[#allocation10 + $0x108] sm:$0xff]
    %v431 = vld [vmem:[#allocation10 + $0x110] sm:$0xff]
    %v432 = vld [vmem:[#allocation10 + $0x118] sm:$0xff]
    %v433 = vld [vmem:[#allocation10 + $0x120] sm:$0xff]
    %v434 = vld [vmem:[#allocation10 + $0x128] sm:$0xff]
    %v435 = vld [vmem:[#allocation10 + $0x130] sm:$0xff]
    %v436 = vld [vmem:[#allocation10 + $0x138] sm:$0xff]
    %v437 = vld [vmem:[#allocation10 + $0x140] sm:$0xff]
    %v438 = vld [vmem:[#allocation10 + $0x148] sm:$0xff]
    %v439 = vld [vmem:[#allocation10 + $0x150] sm:$0xff]
    %v440 = vld [vmem:[#allocation10 + $0x158] sm:$0xff]
    %v441 = vld [vmem:[#allocation10 + $0x160] sm:$0xff]
    %v442 = vld [vmem:[#allocation10 + $0x168] sm:$0xff]
    %v443 = vld [vmem:[#allocation10 + $0x170] sm:$0xff]
    %v444 = vld [vmem:[#allocation10 + $0x178] sm:$0xff]
    %v445 = vld [vmem:[#allocation10 + $0x180] sm:$0xff]
    %v446 = vld [vmem:[#allocation10 + $0x188] sm:$0xff]
    %v447 = vld [vmem:[#allocation10 + $0x190] sm:$0xff]
    %v448 = vld [vmem:[#allocation10 + $0x198] sm:$0xff]
    %v449 = vld [vmem:[#allocation10 + $0x1a0] sm:$0xff]
    %v450 = vld [vmem:[#allocation10 + $0x1a8] sm:$0xff]
    %v451 = vld [vmem:[#allocation10 + $0x1b0] sm:$0xff]
    %v452 = vld [vmem:[#allocation10 + $0x1b8] sm:$0xff]
    %v453 = vld [vmem:[#allocation10 + $0x1c0] sm:$0xff]
    %v454 = vld [vmem:[#allocation10 + $0x1c8] sm:$0xff]
    %v455 = vld [vmem:[#allocation10 + $0x1d0] sm:$0xff]
    %v456 = vld [vmem:[#allocation10 + $0x1d8] sm:$0xff]
    %v457 = vld [vmem:[#allocation10 + $0x1e0] sm:$0xff]
    %v458 = vld [vmem:[#allocation10 + $0x1e8] sm:$0xff]
    %v459 = vld [vmem:[#allocation10 + $0x1f0] sm:$0xff]
    %v460 = vld [vmem:[#allocation10 + $0x1f8] sm:$0xff]
    %v461 = vld [vmem:[#allocation10 + $0x200] sm:$0xff]
    %v462 = vld [vmem:[#allocation10 + $0x208] sm:$0xff]
    %v463 = vld [vmem:[#allocation10 + $0x210] sm:$0xff]
    %v464 = vld [vmem:[#allocation10 + $0x218] sm:$0xff]
    %v465 = vld [vmem:[#allocation10 + $0x220] sm:$0xff]
    %v466 = vld [vmem:[#allocation10 + $0x228] sm:$0xff]
    %v467 = vld [vmem:[#allocation10 + $0x230] sm:$0xff]
    %v468 = vld [vmem:[#allocation10 + $0x238] sm:$0xff]
    %v469 = vld [vmem:[#allocation10 + $0x240] sm:$0xff]
    %v470 = vld [vmem:[#allocation10 + $0x248] sm:$0xff]
    %v471 = vld [vmem:[#allocation10 + $0x250] sm:$0xff]
    %v472 = vld [vmem:[#allocation10 + $0x258] sm:$0xff]
    %v473 = vld [vmem:[#allocation10 + $0x260] sm:$0xff]
    %v474 = vld [vmem:[#allocation10 + $0x268] sm:$0xff]
    %v475 = vld [vmem:[#allocation10 + $0x270] sm:$0xff]
    %v476 = vld [vmem:[#allocation10 + $0x278] sm:$0xff]
    %v477 = vld [vmem:[#allocation10 + $0x280] sm:$0xff]
    %v478 = vld [vmem:[#allocation10 + $0x288] sm:$0xff]
    %v479 = vld [vmem:[#allocation10 + $0x290] sm:$0xff]
    %v480 = vld [vmem:[#allocation10 + $0x298] sm:$0xff]
    %v481 = vld [vmem:[#allocation10 + $0x2a0] sm:$0xff]
    %v482 = vld [vmem:[#allocation10 + $0x2a8] sm:$0xff]
    %v483 = vld [vmem:[#allocation10 + $0x2b0] sm:$0xff]
    %v484 = vld [vmem:[#allocation10 + $0x2b8] sm:$0xff]
    %v485 = vld [vmem:[#allocation10 + $0x2c0] sm:$0xff]
    %v486 = vld [vmem:[#allocation10 + $0x2c8] sm:$0xff]
    %v487 = vld [vmem:[#allocation10 + $0x2d0] sm:$0xff]
    %v488 = vld [vmem:[#allocation10 + $0x2d8] sm:$0xff]
    %v489 = vld [vmem:[#allocation10 + $0x2e0] sm:$0xff]
    %v490 = vld [vmem:[#allocation10 + $0x2e8] sm:$0xff]
    %v491 = vld [vmem:[#allocation10 + $0x2f0] sm:$0xff]
    %v492 = vld [vmem:[#allocation10 + $0x2f8] sm:$0xff]
    %v493 = vld [vmem:[#allocation10 + $0x300] sm:$0xff]
    %v494 = vld [vmem:[#allocation10 + $0x308] sm:$0xff]
    %v495 = vld [vmem:[#allocation10 + $0x310] sm:$0xff]
    %v496 = vld [vmem:[#allocation10 + $0x318] sm:$0xff]
    %v497 = vld [vmem:[#allocation10 + $0x320] sm:$0xff]
    %v498 = vld [vmem:[#allocation10 + $0x328] sm:$0xff]
    %v499 = vld [vmem:[#allocation10 + $0x330] sm:$0xff]
    %v500 = vld [vmem:[#allocation10 + $0x338] sm:$0xff]
    %v501 = vld [vmem:[#allocation10 + $0x340] sm:$0xff]
    %v502 = vld [vmem:[#allocation10 + $0x348] sm:$0xff]
    %v503 = vld [vmem:[#allocation10 + $0x350] sm:$0xff]
    %v504 = vld [vmem:[#allocation10 + $0x358] sm:$0xff]
    %v505 = vld [vmem:[#allocation10 + $0x360] sm:$0xff]
    %v506 = vld [vmem:[#allocation10 + $0x368] sm:$0xff]
    %v507 = vld [vmem:[#allocation10 + $0x370] sm:$0xff]
    %v508 = vld [vmem:[#allocation10 + $0x378] sm:$0xff]
    %v509 = vld [vmem:[#allocation10 + $0x380] sm:$0xff]
    %v510 = vld [vmem:[#allocation10 + $0x388] sm:$0xff]
    %v511 = vld [vmem:[#allocation10 + $0x390] sm:$0xff]
    %v512 = vld [vmem:[#allocation10 + $0x398] sm:$0xff]
    %v513 = vld [vmem:[#allocation10 + $0x3a0] sm:$0xff]
    %v514 = vld [vmem:[#allocation10 + $0x3a8] sm:$0xff]
    %v515 = vld [vmem:[#allocation10 + $0x3b0] sm:$0xff]
    %v516 = vld [vmem:[#allocation10 + $0x3b8] sm:$0xff]
    %v517 = vld [vmem:[#allocation10 + $0x3c0] sm:$0xff]
    %v518 = vld [vmem:[#allocation10 + $0x3c8] sm:$0xff]
    %v519 = vld [vmem:[#allocation10 + $0x3d0] sm:$0xff]
    %v520 = vld [vmem:[#allocation10 + $0x3d8] sm:$0xff]
    %v521 = vld [vmem:[#allocation10 + $0x3e0] sm:$0xff]
    %v522 = vld [vmem:[#allocation10 + $0x3e8] sm:$0xff]
    %v523 = vld [vmem:[#allocation10 + $0x3f0] sm:$0xff]
    %v524 = vld [vmem:[#allocation10 + $0x3f8] sm:$0xff]
    %v525 = vld [vmem:[#allocation10 + $0x400] sm:$0xff]
    %v526 = vld [vmem:[#allocation10 + $0x408] sm:$0xff]
    %v527 = vld [vmem:[#allocation10 + $0x410] sm:$0xff]
    %v528 = vld [vmem:[#allocation10 + $0x418] sm:$0xff]
    %v529 = vld [vmem:[#allocation10 + $0x420] sm:$0xff]
    %v530 = vld [vmem:[#allocation10 + $0x428] sm:$0xff]
    %v531 = vld [vmem:[#allocation10 + $0x430] sm:$0xff]
    %v532 = vld [vmem:[#allocation10 + $0x438] sm:$0xff]
    %v533 = vld [vmem:[#allocation10 + $0x440] sm:$0xff]
    %v534 = vld [vmem:[#allocation10 + $0x448] sm:$0xff]
    %v535 = vld [vmem:[#allocation10 + $0x450] sm:$0xff]
    %v536 = vld [vmem:[#allocation10 + $0x458] sm:$0xff]
    %v537 = vld [vmem:[#allocation10 + $0x460] sm:$0xff]
    %v538 = vld [vmem:[#allocation10 + $0x468] sm:$0xff]
    %v539 = vld [vmem:[#allocation10 + $0x470] sm:$0xff]
    %v540 = vld [vmem:[#allocation10 + $0x478] sm:$0xff]
    %v541 = vld [vmem:[#allocation10 + $0x480] sm:$0xff]
    %v542 = vld [vmem:[#allocation10 + $0x488] sm:$0xff]
    %v543 = vld [vmem:[#allocation10 + $0x490] sm:$0xff]
    %v544 = vld [vmem:[#allocation10 + $0x498] sm:$0xff]
    %v545 = vld [vmem:[#allocation10 + $0x4a0] sm:$0xff]
    %v546 = vld [vmem:[#allocation10 + $0x4a8] sm:$0xff]
    %v547 = vld [vmem:[#allocation10 + $0x4b0] sm:$0xff]
    %v548 = vld [vmem:[#allocation10 + $0x4b8] sm:$0xff]
    %v549 = vld [vmem:[#allocation10 + $0x4c0] sm:$0xff]
    %v550 = vld [vmem:[#allocation10 + $0x4c8] sm:$0xff]
    %v551 = vld [vmem:[#allocation10 + $0x4d0] sm:$0xff]
    %v552 = vld [vmem:[#allocation10 + $0x4d8] sm:$0xff]
    %v553 = vld [vmem:[#allocation10 + $0x4e0] sm:$0xff]
    %v554 = vld [vmem:[#allocation10 + $0x4e8] sm:$0xff]
    %v555 = vld [vmem:[#allocation10 + $0x4f0] sm:$0xff]
    %v556 = vld [vmem:[#allocation10 + $0x4f8] sm:$0xff]
    %v557 = vld [vmem:[%s8] sm:$0x1f]
    %v559 = vlaneseq
    %v560 = vshrl.u32 %v559, 7
    %v561 = vsub.s32 0, %v560
    %v562 = vrot.slane %v557, %v561
    %v563 = vlaneseq
    %v564 = vshrl.u32 %v563, 7
    %v565 = vsub.s32 1, %v564
    %v566 = vrot.slane %v557, %v565
    %v567 = vlaneseq
    %v568 = vshrl.u32 %v567, 7
    %v569 = vsub.s32 2, %v568
    %v570 = vrot.slane %v557, %v569
    %v571 = vlaneseq
    %v572 = vshrl.u32 %v571, 7
    %v573 = vsub.s32 3, %v572
    %v574 = vrot.slane %v557, %v573
    %v575 = vlaneseq
    %v576 = vshrl.u32 %v575, 7
    %v577 = vsub.s32 4, %v576
    %v578 = vrot.slane %v557, %v577
    %584 = vmatprep.subr.mxu0 %v473
    %585 = vmatpush1.msra.mxu0 %v472
    %586 = vmatprep.subr.mxu0 %v468
    %587 = vmatpush1.msra.mxu0 %v467
    %588 = vmatprep.subr.mxu0 %v463
    %589 = vmatpush1.msra.mxu0 %v462
    %590 = vmatprep.subr.mxu0 %v458
    %591 = vmatpush1.msra.mxu0 %v457
    %592 = vmatprep.subr.mxu0 %v453
    %593 = vmatpush1.msra.mxu0 %v452
    %594 = vmatprep.subr.mxu0 %v448
    %595 = vmatpush1.msra.mxu0 %v447
    %596 = vmatprep.subr.mxu0 %v443
    %597 = vmatpush1.msra.mxu0 %v442
    %598 = vmatprep.subr.mxu0 %v438
    %599 = vmatpush1.msra.mxu0 %v437
    %600 = vmatprep.subr.mxu0 %v433
    %601 = vmatpush1.msra.mxu0 %v432
    %602 = vmatprep.subr.mxu0 %v428
    %603 = vmatpush1.msra.mxu0 %v427
    %604 = vmatprep.subr.mxu0 %v423
    %605 = vmatpush1.msra.mxu0 %v422
    %606 = vmatprep.subr.mxu0 %v418
    %607 = vmatpush1.msra.mxu0 %v417
    %608 = vmatprep.subr.mxu0 %v413
    %609 = vmatpush1.msra.mxu0 %v412
    %610 = vmatprep.subr.mxu0 %v408
    %611 = vmatpush1.msra.mxu0 %v407
    %612 = vmatprep.subr.mxu0 %v403
    %613 = vmatpush1.msra.mxu0 %v402
    %614 = vmatprep.subr.mxu0 %v398
    %615 = vmatpush1.msra.mxu0 %v397
    %616 = vmatprep.subr.mxu0 %v553
    %617 = vmatpush2.msra.mxu0 %v552
    %618 = vmatprep.subr.mxu0 %v548
    %619 = vmatpush2.msra.mxu0 %v547
    %620 = vmatprep.subr.mxu0 %v543
    %621 = vmatpush2.msra.mxu0 %v542
    %622 = vmatprep.subr.mxu0 %v538
    %623 = vmatpush2.msra.mxu0 %v537
    %624 = vmatprep.subr.mxu0 %v533
    %625 = vmatpush2.msra.mxu0 %v532
    %626 = vmatprep.subr.mxu0 %v528
    %627 = vmatpush2.msra.mxu0 %v527
    %628 = vmatprep.subr.mxu0 %v523
    %629 = vmatpush2.msra.mxu0 %v522
    %630 = vmatprep.subr.mxu0 %v518
    %631 = vmatpush2.msra.mxu0 %v517
    %632 = vmatprep.subr.mxu0 %v513
    %633 = vmatpush2.msra.mxu0 %v512
    %634 = vmatprep.subr.mxu0 %v508
    %635 = vmatpush2.msra.mxu0 %v507
    %636 = vmatprep.subr.mxu0 %v503
    %637 = vmatpush2.msra.mxu0 %v502
    %638 = vmatprep.subr.mxu0 %v498
    %639 = vmatpush2.msra.mxu0 %v497
    %640 = vmatprep.subr.mxu0 %v493
    %641 = vmatpush2.msra.mxu0 %v492
    %642 = vmatprep.subr.mxu0 %v488
    %643 = vmatpush2.msra.mxu0 %v487
    %644 = vmatprep.subr.mxu0 %v483
    %645 = vmatpush2.msra.mxu0 %v482
    %646 = vmatprep.subr.mxu0 %v478
    %647 = vmatpush2.msra.mxu0 %v477
    %648 = vmatprep.mubr.f32.mxu0 %v396
    %649 = vmatmul.mubr.f32.gmra.mxu0 %v395
    %v650 = vpop.f32.mrf.mxu0
    %v651 = vadd.f32 %v562, %v650
    %v652 = vpop.f32.mrf.mxu0
    %v653 = vadd.f32 %v566, %v652
    %654 = vdwg.mxu0
    %655 = vmatprep.subr.mxu0 %v475
    %656 = vmatpush1.msra.mxu0 %v474
    %657 = vmatprep.subr.mxu0 %v470
    %658 = vmatpush1.msra.mxu0 %v469
    %659 = vmatprep.subr.mxu0 %v465
    %660 = vmatpush1.msra.mxu0 %v464
    %661 = vmatprep.subr.mxu0 %v460
    %662 = vmatpush1.msra.mxu0 %v459
    %663 = vmatprep.subr.mxu0 %v455
    %664 = vmatpush1.msra.mxu0 %v454
    %665 = vmatprep.subr.mxu0 %v450
    %666 = vmatpush1.msra.mxu0 %v449
    %667 = vmatprep.subr.mxu0 %v445
    %668 = vmatpush1.msra.mxu0 %v444
    %669 = vmatprep.subr.mxu0 %v440
    %670 = vmatpush1.msra.mxu0 %v439
    %671 = vmatprep.subr.mxu0 %v435
    %672 = vmatpush1.msra.mxu0 %v434
    %673 = vmatprep.subr.mxu0 %v430
    %674 = vmatpush1.msra.mxu0 %v429
    %675 = vmatprep.subr.mxu0 %v425
    %676 = vmatpush1.msra.mxu0 %v424
    %677 = vmatprep.subr.mxu0 %v420
    %678 = vmatpush1.msra.mxu0 %v419
    %679 = vmatprep.subr.mxu0 %v415
    %680 = vmatpush1.msra.mxu0 %v414
    %681 = vmatprep.subr.mxu0 %v410
    %682 = vmatpush1.msra.mxu0 %v409
    %683 = vmatprep.subr.mxu0 %v405
    %684 = vmatpush1.msra.mxu0 %v404
    %685 = vmatprep.subr.mxu0 %v400
    %686 = vmatpush1.msra.mxu0 %v399
    %687 = vmatprep.subr.mxu0 %v555
    %688 = vmatpush2.msra.mxu0 %v554
    %689 = vmatprep.subr.mxu0 %v550
    %690 = vmatpush2.msra.mxu0 %v549
    %691 = vmatprep.subr.mxu0 %v545
    %692 = vmatpush2.msra.mxu0 %v544
    %693 = vmatprep.subr.mxu0 %v540
    %694 = vmatpush2.msra.mxu0 %v539
    %695 = vmatprep.subr.mxu0 %v535
    %696 = vmatpush2.msra.mxu0 %v534
    %697 = vmatprep.subr.mxu0 %v530
    %698 = vmatpush2.msra.mxu0 %v529
    %699 = vmatprep.subr.mxu0 %v525
    %700 = vmatpush2.msra.mxu0 %v524
    %701 = vmatprep.subr.mxu0 %v520
    %702 = vmatpush2.msra.mxu0 %v519
    %703 = vmatprep.subr.mxu0 %v515
    %704 = vmatpush2.msra.mxu0 %v514
    %705 = vmatprep.subr.mxu0 %v510
    %706 = vmatpush2.msra.mxu0 %v509
    %707 = vmatprep.subr.mxu0 %v505
    %708 = vmatpush2.msra.mxu0 %v504
    %709 = vmatprep.subr.mxu0 %v500
    %710 = vmatpush2.msra.mxu0 %v499
    %711 = vmatprep.subr.mxu0 %v495
    %712 = vmatpush2.msra.mxu0 %v494
    %713 = vmatprep.subr.mxu0 %v490
    %714 = vmatpush2.msra.mxu0 %v489
    %715 = vmatprep.subr.mxu0 %v485
    %716 = vmatpush2.msra.mxu0 %v484
    %717 = vmatprep.subr.mxu0 %v480
    %718 = vmatpush2.msra.mxu0 %v479
    %719 = vmatprep.mubr.f32.mxu0 %v396
    %720 = vmatmul.mubr.f32.gmra.mxu0 %v395
    %v721 = vpop.f32.mrf.mxu0
    %v722 = vadd.f32 %v570, %v721
    %v723 = vpop.f32.mrf.mxu0
    %v724 = vadd.f32 %v574, %v723
    %725 = vdwg.mxu0
    %726 = vmatprep.subr.mxu0 0.0
    %727 = vmatpush1.msra.mxu0 %v476
    %728 = vmatprep.subr.mxu0 0.0
    %729 = vmatpush1.msra.mxu0 %v471
    %730 = vmatprep.subr.mxu0 0.0
    %731 = vmatpush1.msra.mxu0 %v466
    %732 = vmatprep.subr.mxu0 0.0
    %733 = vmatpush1.msra.mxu0 %v461
    %734 = vmatprep.subr.mxu0 0.0
    %735 = vmatpush1.msra.mxu0 %v456
    %736 = vmatprep.subr.mxu0 0.0
    %737 = vmatpush1.msra.mxu0 %v451
    %738 = vmatprep.subr.mxu0 0.0
    %739 = vmatpush1.msra.mxu0 %v446
    %740 = vmatprep.subr.mxu0 0.0
    %741 = vmatpush1.msra.mxu0 %v441
    %742 = vmatprep.subr.mxu0 0.0
    %743 = vmatpush1.msra.mxu0 %v436
    %744 = vmatprep.subr.mxu0 0.0
    %745 = vmatpush1.msra.mxu0 %v431
    %746 = vmatprep.subr.mxu0 0.0
    %747 = vmatpush1.msra.mxu0 %v426
    %748 = vmatprep.subr.mxu0 0.0
    %749 = vmatpush1.msra.mxu0 %v421
    %750 = vmatprep.subr.mxu0 0.0
    %751 = vmatpush1.msra.mxu0 %v416
    %752 = vmatprep.subr.mxu0 0.0
    %753 = vmatpush1.msra.mxu0 %v411
    %754 = vmatprep.subr.mxu0 0.0
    %755 = vmatpush1.msra.mxu0 %v406
    %756 = vmatprep.subr.mxu0 0.0
    %757 = vmatpush1.msra.mxu0 %v401
    %758 = vmatprep.subr.mxu0 0.0
    %759 = vmatpush2.msra.mxu0 %v556
    %760 = vmatprep.subr.mxu0 0.0
    %761 = vmatpush2.msra.mxu0 %v551
    %762 = vmatprep.subr.mxu0 0.0
    %763 = vmatpush2.msra.mxu0 %v546
    %764 = vmatprep.subr.mxu0 0.0
    %765 = vmatpush2.msra.mxu0 %v541
    %766 = vmatprep.subr.mxu0 0.0
    %767 = vmatpush2.msra.mxu0 %v536
    %768 = vmatprep.subr.mxu0 0.0
    %769 = vmatpush2.msra.mxu0 %v531
    %770 = vmatprep.subr.mxu0 0.0
    %771 = vmatpush2.msra.mxu0 %v526
    %772 = vmatprep.subr.mxu0 0.0
    %773 = vmatpush2.msra.mxu0 %v521
    %774 = vmatprep.subr.mxu0 0.0
    %775 = vmatpush2.msra.mxu0 %v516
    %776 = vmatprep.subr.mxu0 0.0
    %777 = vmatpush2.msra.mxu0 %v511
    %778 = vmatprep.subr.mxu0 0.0
    %779 = vmatpush2.msra.mxu0 %v506
    %780 = vmatprep.subr.mxu0 0.0
    %781 = vmatpush2.msra.mxu0 %v501
    %782 = vmatprep.subr.mxu0 0.0
    %783 = vmatpush2.msra.mxu0 %v496
    %784 = vmatprep.subr.mxu0 0.0
    %785 = vmatpush2.msra.mxu0 %v491
    %786 = vmatprep.subr.mxu0 0.0
    %787 = vmatpush2.msra.mxu0 %v486
    %788 = vmatprep.subr.mxu0 0.0
    %789 = vmatpush2.msra.mxu0 %v481
    %790 = vmatprep.mubr.f32.mxu0 %v396
    %791 = vmatmul.mubr.f32.gmra.mxu0 %v395
    %v792 = vpop.f32.mrf.mxu0
    %v793 = vadd.f32 %v578, %v792
    %v794 = vpop.f32.mrf.mxu0
    %795 = vdwg.mxu0
    %v796 = vadd.f32 %v653, %v722
    %v797 = vadd.f32 %v796, %v724
    %v798 = vadd.f32 %v797, %v793
    %v799 = vmul.f32 %v798, 0.25
    %v800 = vadd.f32 %v651, %v653
    %v801 = vsub.f32 %v800, %v799
    %802 = vmax.xlane.f32.xlu0 %v801
    %v803 = vpop.xlane.xlu0 %802
    %v804 = vsub.f32 %v801, %v803
    %v805 = vmul.f32 %v804, 1.442695
    %v806 = vpow.pop %v805
    %807 = vadd.xlane.f32.xlu0 %v806
    %v808 = vpop.xlane.xlu0 %807
    %v809 = vrcp.pop %v808
    %v810 = vmul.f32 %v806, %v809
    %811 = vst [vmem:[#allocation11] sm:$0xff] %v810
    %v812 = vadd.f32 %v651, %v722
    %v813 = vsub.f32 %v812, %v799
    %814 = vmax.xlane.f32.xlu0 %v813
    %v815 = vpop.xlane.xlu0 %814
    %v816 = vsub.f32 %v813, %v815
    %v817 = vmul.f32 %v816, 1.442695
    %v818 = vpow.pop %v817
    %819 = vadd.xlane.f32.xlu0 %v818
    %v820 = vpop.xlane.xlu0 %819
    %v821 = vrcp.pop %v820
    %v822 = vmul.f32 %v818, %v821
    %823 = vst [vmem:[#allocation11 + $0x8] sm:$0xff] %v822
    %v824 = vadd.f32 %v651, %v724
    %v825 = vsub.f32 %v824, %v799
    %826 = vmax.xlane.f32.xlu0 %v825
    %v827 = vpop.xlane.xlu0 %826
    %v828 = vsub.f32 %v825, %v827
    %v829 = vmul.f32 %v828, 1.442695
    %v830 = vpow.pop %v829
    %831 = vadd.xlane.f32.xlu0 %v830
    %v832 = vpop.xlane.xlu0 %831
    %v833 = vrcp.pop %v832
    %v834 = vmul.f32 %v830, %v833
    %835 = vst [vmem:[#allocation11 + $0x10] sm:$0xff] %v834
    %v836 = vadd.f32 %v651, %v793
    %v837 = vsub.f32 %v836, %v799
    %838 = vmax.xlane.f32.xlu0 %v837
    %v839 = vpop.xlane.xlu0 %838
    %v840 = vsub.f32 %v837, %v839
    %v841 = vmul.f32 %v840, 1.442695
    %v842 = vpow.pop %v841
    %843 = vadd.xlane.f32.xlu0 %v842
    %v844 = vpop.xlane.xlu0 %843
    %v845 = vrcp.pop %v844
    %v846 = vmul.f32 %v842, %v845
    %847 = vst [vmem:[#allocation11 + $0x18] sm:$0xff] %v846
    // Predicated region
    $region58: #{tpu_custom_call.1} parent=1 // pred_check
      _
    $region59: #{tpu_custom_call.1} parent=1 // pred_check_branch
      %849 = sbr.rel (0) target = $region61
    $region60: #{tpu_custom_call.1} parent=1 // pred_region
      %s851 = ssub.s32 512, 512
      %852 = vsyncadd [#allocation4], %s851
      %s854 = sshll.u32 [#allocation11], 4
      %s855 = int_to_ptr.vmem [resolvable:$true] %s854
      %857 = dma.vmem_to_hbm [thread:$0]  %s855, 512, %s9, [#allocation4]
    $region61: #{tpu_custom_call.1} parent=1 // pred_fallthru
      _
    // Predicated region
    $region62: #{tpu_custom_call.1} parent=1 // pred_check
      _
    $region63: #{tpu_custom_call.1} parent=1 // pred_check_branch
      %859 = sbr.rel (0) target = $region65
    $region64: #{tpu_custom_call.1} parent=1 // pred_region
      %860 = dma.done [#allocation4], 512
    $region65: #{tpu_custom_call.1} parent=1 // pred_fallthru
      _
    %861 = vsyncpa [#allocation3], 1
    %862 = vsyncpa [#allocation6], 1
    %863 = vsyncpa [#allocation9], 1
    %864 = vsyncpa [#allocation4], 1

</llo_original>
